<compile_context>
chip_gen: v7x
topology: tpu7x:2x2x1
jax: 0.10.0
libtpu: 0.0.40
codegen_flags: <defaults>
</compile_context>

<pallas_src>
import functools
import math

import jax
import jax.numpy as jnp
from jax.experimental import pallas as pl
from jax.experimental.pallas import tpu as pltpu

# ---- model hyper-parameters (args) ------------------------------------------
HIDDEN_SIZE = 32     # args.hidden_size
NUM_HIDDEN = 2       # args.num_hidden
OB_DIM = 12
AC_DIM = 4
BATCH = 8

_LANE = 128          # lane width; all packed params / activations use it
_MAX_TILE_B = 2048   # max batch rows per grid step


def _round_up(x, m):
    return (x + m - 1) // m * m


# -----------------------------------------------------------------------------
# kernel
# -----------------------------------------------------------------------------
def dynamics_kernel(n_layers, s_ref, a_ref, ws_ref, wa_ref, b0_ref, sid_ref,
                    w_ref, out_ref):
    """Whole MLP forward for one batch tile.

    s_ref   : (tile_b, ob_dim)          states tile
    a_ref   : (tile_b, ac_dim)          actions tile
    ws_ref  : (ob_dim, 128)             layer-0 weights for states  (lanes [0,H))
    wa_ref  : (ac_dim, 128)             layer-0 weights for actions (lanes [0,H))
    b0_ref  : (1, 128)                  layer-0 bias row, lane 127 == 1.0
    sid_ref : (ob_dim, 128)             identity scatter: states -> output lanes [0,ob)
    w_ref   : (n_layers, 128, 128)      remaining layers, biases folded into row 127
    out_ref : (tile_b, 128)             [ next_state | pred_delta | pred_reward | 0 ]
    """
    f32 = jnp.float32
    states = s_ref[...]

    # --- trunk layer 0: split matmul (replaces torch.cat) + bias + ReLU ------
    # Lane 127 of the activation becomes exactly 1.0 (from b0_row) and is
    # preserved by every later layer; it carries the folded biases.
    x = (jnp.dot(states, ws_ref[...], preferred_element_type=f32)
         + jnp.dot(a_ref[...], wa_ref[...], preferred_element_type=f32)
         + b0_ref[...])
    x = jnp.maximum(x, 0.0)

    # --- trunk hidden layers + fused head first layer: relu(x @ W) -----------
    for i in range(n_layers - 1):
        x = jnp.maximum(jnp.dot(x, w_ref[i], preferred_element_type=f32), 0.0)

    # --- fused head second layer (no ReLU): lanes [0,ob)=delta, [ob,2ob)=delta,
    #     [2ob]=reward, rest 0 -------------------------------------------------
    head = jnp.dot(x, w_ref[n_layers - 1], preferred_element_type=f32)

    # add states into the next_state lanes [0, ob) via a tiny identity matmul
    # (avoids any in-kernel lane pad/concat relayout) and store once, lane-dense.
    out_ref[...] = head + jnp.dot(states, sid_ref[...], preferred_element_type=f32)


# -----------------------------------------------------------------------------
# parameter packing (pure shape-static JAX; jit-friendly)
# -----------------------------------------------------------------------------
def pack_params(params, ob_dim, ac_dim, H, num_hidden):
    """Pack per-layer (w, b) into full-128-lane blocks.

    Returns (w_s, w_a, b0_row, sid, w_slab):
      w_s    (ob_dim, 128)           layer-0 states weights, lanes [0,H)
      w_a    (ac_dim, 128)           layer-0 actions weights, lanes [0,H)
      b0_row (1, 128)                layer-0 bias, lane 127 = 1.0 (ones lane)
      sid    (ob_dim, 128)           identity, routes states to output lanes [0,ob)
      w_slab (num_hidden+2,128,128)  hidden*num_hidden, fused head l0, fused head l2
    Each slab block has its bias in row 127 and [127,127]=1 to propagate the
    ones lane; the final block duplicates the delta columns to produce the
    [delta | delta | reward] output layout directly.
    """
    L = _LANE
    f32 = jnp.float32
    w0, b0 = params[0]                          # (ob+ac, H), (1, H)
    hidden = params[1:1 + num_hidden]           # (H, H) * num_hidden
    wd0, bd0 = params[1 + num_hidden]           # delta_head  Linear(H, H)
    wd2, bd2 = params[2 + num_hidden]           # delta_head  Linear(H, ob_dim)
    wr0, br0 = params[3 + num_hidden]           # reward_head Linear(H, H)
    wr2, br2 = params[4 + num_hidden]           # reward_head Linear(H, 1)

    w_s = jnp.zeros((ob_dim, L), f32).at[:, :H].set(w0[:ob_dim])
    w_a = jnp.zeros((ac_dim, L), f32).at[:, :H].set(w0[ob_dim:])
    b0_row = (jnp.zeros((1, L), f32)
              .at[0, :H].set(b0[0])
              .at[0, L - 1].set(1.0))           # ones lane

    slabs = []
    # trunk hidden layers (H -> H)
    for w, b in hidden:
        blk = (jnp.zeros((L, L), f32)
               .at[:H, :H].set(w)
               .at[L - 1, :H].set(b[0])
               .at[L - 1, L - 1].set(1.0))
        slabs.append(blk)

    # fused head first layers: (H -> 2H) = [delta_head l0 | reward_head l0]
    blk = (jnp.zeros((L, L), f32)
           .at[:H, :H].set(wd0)
           .at[:H, H:2 * H].set(wr0)
           .at[L - 1, :H].set(bd0[0])
           .at[L - 1, H:2 * H].set(br0[0])
           .at[L - 1, L - 1].set(1.0))
    slabs.append(blk)

    # fused head second layers, output layout [delta | delta | reward]
    blk = (jnp.zeros((L, L), f32)
           .at[:H, :ob_dim].set(wd2)
           .at[:H, ob_dim:2 * ob_dim].set(wd2)
           .at[H:2 * H, 2 * ob_dim].set(wr2[:, 0])
           .at[L - 1, :ob_dim].set(bd2[0])
           .at[L - 1, ob_dim:2 * ob_dim].set(bd2[0])
           .at[L - 1, 2 * ob_dim].set(br2[0, 0]))
    slabs.append(blk)

    w_slab = jnp.stack(slabs, axis=0)           # (num_hidden + 2, 128, 128)

    sid = jnp.eye(ob_dim, L, dtype=f32)         # states -> output lanes [0, ob)
    return w_s, w_a, b0_row, sid, w_slab


# -----------------------------------------------------------------------------
# wrapper
# -----------------------------------------------------------------------------
@functools.partial(jax.jit, static_argnames=("num_hidden",))
def dynamics_forward(states, actions, params, *, num_hidden=NUM_HIDDEN):
    """Returns (next_state_preds, pred_delta, pred_reward)."""
    b_sz, ob_dim = states.shape
    ac_dim = actions.shape[1]
    H = params[0][0].shape[1]
    n_layers = num_hidden + 2

    w_s, w_a, b0_row, sid, w_slab = pack_params(params, ob_dim, ac_dim, H, num_hidden)

    # batch tiling: multiple of 8; >= 2 grid steps when possible (v7x dual-TC);
    # large tiles to amortize per-step overhead.
    tile_b = _round_up(b_sz, 8)
    if b_sz > 8:
        tile_b = min(tile_b, max(8, _round_up((b_sz + 1) // 2, 8)))
    tile_b = min(tile_b, _MAX_TILE_B)
    padded_b = _round_up(b_sz, tile_b)
    if padded_b != b_sz:
        pad = padded_b - b_sz
        states_p = jnp.pad(states, ((0, pad), (0, 0)))
        actions_p = jnp.pad(actions, ((0, pad), (0, 0)))
    else:
        states_p, actions_p = states, actions

    kernel = functools.partial(dynamics_kernel, n_layers)

    flops = 2 * padded_b * (H * (ob_dim + ac_dim) + num_hidden * H * H
                            + 2 * H * H + 2 * H * (ob_dim + 1) + ob_dim)
    bytes_acc = 4 * (padded_b * (ob_dim + ac_dim + _LANE)
                     + (n_layers * _LANE + 2 * ob_dim + ac_dim + 1) * _LANE)

    out = pl.pallas_call(
        kernel,
        out_shape=jax.ShapeDtypeStruct((padded_b, _LANE), jnp.float32),
        grid_spec=pltpu.PrefetchScalarGridSpec(
            num_scalar_prefetch=0,
            grid=(padded_b // tile_b,),
            in_specs=[
                pl.BlockSpec((tile_b, ob_dim), lambda i: (i, 0)),
                pl.BlockSpec((tile_b, ac_dim), lambda i: (i, 0)),
                pl.BlockSpec((ob_dim, _LANE), lambda i: (0, 0)),       # resident
                pl.BlockSpec((ac_dim, _LANE), lambda i: (0, 0)),       # resident
                pl.BlockSpec((1, _LANE), lambda i: (0, 0)),            # resident
                pl.BlockSpec((ob_dim, _LANE), lambda i: (0, 0)),       # resident
                pl.BlockSpec((n_layers, _LANE, _LANE),
                             lambda i: (0, 0, 0)),                     # resident
            ],
            out_specs=pl.BlockSpec((tile_b, _LANE), lambda i: (i, 0)),
        ),
        compiler_params=pltpu.CompilerParams(
            dimension_semantics=("parallel",)),   # shards batch tiles across TCs
        cost_estimate=pl.CostEstimate(flops=int(flops), transcendentals=0,
                                      bytes_accessed=int(bytes_acc)),
    )(states_p, actions_p, w_s, w_a, b0_row, sid, w_slab)

    next_state = out[:b_sz, :ob_dim]
    pred_delta = out[:b_sz, ob_dim:2 * ob_dim]
    pred_reward = out[:b_sz, 2 * ob_dim:2 * ob_dim + 1]
    return next_state, pred_delta, pred_reward


# -----------------------------------------------------------------------------
# init + pure-JAX reference
# -----------------------------------------------------------------------------
def init_params(key, ob_dim, ac_dim, hidden_size, num_hidden):
    """PyTorch-style uniform(-1/sqrt(fan_in), 1/sqrt(fan_in)) init."""
    dims = [(ob_dim + ac_dim, hidden_size)]
    for _ in range(num_hidden):
        dims.append((hidden_size, hidden_size))
    dims.append((hidden_size, hidden_size))   # delta_head l0
    dims.append((hidden_size, ob_dim))        # delta_head l2
    dims.append((hidden_size, hidden_size))   # reward_head l0
    dims.append((hidden_size, 1))             # reward_head l2

    params = []
    for (din, dout) in dims:
        key, kw, kb = jax.random.split(key, 3)
        bound = 1.0 / math.sqrt(din)
        w = jax.random.uniform(kw, (din, dout), jnp.float32, -bound, bound)
        b = jax.random.uniform(kb, (1, dout), jnp.float32, -bound, bound)
        params.append((w, b))
    return params


def dynamics_forward_ref(states, actions, params, num_hidden=NUM_HIDDEN):
    """Pure-JAX reference (mirrors the PyTorch module layer-by-layer)."""
    x = jnp.concatenate([states, actions], axis=1)
    idx = 0
    for _ in range(1 + num_hidden):
        w, b = params[idx]
        x = jnp.maximum(x @ w + b, 0.0)
        idx += 1
    latents = x
    w, b = params[idx]; idx += 1
    h = jnp.maximum(latents @ w + b, 0.0)
    w, b = params[idx]; idx += 1
    pred_delta = h @ w + b
    w, b = params[idx]; idx += 1
    h = jnp.maximum(latents @ w + b, 0.0)
    w, b = params[idx]; idx += 1
    pred_reward = h @ w + b
    return pred_delta + states, pred_delta, pred_reward


# TODO(synk): the module's optimizer / loss / update() training step is not a
# forward-pass op and is not implemented here (forward only).

if __name__ == "__main__":
    key = jax.random.PRNGKey(0)
    k_params, k_s, k_a = jax.random.split(key, 3)

    params = init_params(k_params, OB_DIM, AC_DIM, HIDDEN_SIZE, NUM_HIDDEN)
    states = jax.random.normal(k_s, (BATCH, OB_DIM), jnp.float32)
    actions = jax.random.normal(k_a, (BATCH, AC_DIM), jnp.float32)

    next_state, pred_delta, pred_reward = dynamics_forward(states, actions, params)
    jax.block_until_ready((next_state, pred_delta, pred_reward))

    # correctness check vs pure-JAX reference
    ref_next, ref_delta, ref_rew = dynamics_forward_ref(states, actions, params)
    assert next_state.shape == (BATCH, OB_DIM)
    assert pred_delta.shape == (BATCH, OB_DIM)
    assert pred_reward.shape == (BATCH, 1)
    assert jnp.allclose(next_state, ref_next, atol=1e-5)
    assert jnp.allclose(pred_delta, ref_delta, atol=1e-5)
    assert jnp.allclose(pred_reward, ref_rew, atol=1e-5)

    print("KERNEL_OK")
</pallas_src>

<mosaic_0001>
module attributes {stable_mosaic.version = 11 : i64} {
  func.func @dynamics_kernel(%arg0: i32, %arg1: memref<8x12xf32, #tpu.memory_space<vmem>>, %arg2: memref<8x4xf32, #tpu.memory_space<vmem>>, %arg3: memref<12x128xf32, #tpu.memory_space<vmem>>, %arg4: memref<4x128xf32, #tpu.memory_space<vmem>>, %arg5: memref<1x128xf32, #tpu.memory_space<vmem>>, %arg6: memref<12x128xf32, #tpu.memory_space<vmem>>, %arg7: memref<4x128x128xf32, #tpu.memory_space<vmem>>, %arg8: memref<8x128xf32, #tpu.memory_space<vmem>>) attributes {dimension_semantics = [#tpu.dimension_semantics<parallel>], iteration_bounds = array<i64: 1>, scalar_prefetch = 0 : i64, scratch_operands = 0 : i64, tpu.core_type = #tpu.core_type<tc>, window_params = [{transform_indices = @transform_0, window_bounds = array<i64: 8, 12>}, {transform_indices = @transform_1, window_bounds = array<i64: 8, 4>}, {pipeline_mode = #tpu.pipeline_mode<synchronous>, transform_indices = @transform_2, window_bounds = array<i64: 12, 128>}, {pipeline_mode = #tpu.pipeline_mode<synchronous>, transform_indices = @transform_3, window_bounds = array<i64: 4, 128>}, {pipeline_mode = #tpu.pipeline_mode<synchronous>, transform_indices = @transform_4, window_bounds = array<i64: 1, 128>}, {pipeline_mode = #tpu.pipeline_mode<synchronous>, transform_indices = @transform_5, window_bounds = array<i64: 12, 128>}, {pipeline_mode = #tpu.pipeline_mode<synchronous>, transform_indices = @transform_6, window_bounds = array<i64: 4, 128, 128>}, {transform_indices = @transform_7, window_bounds = array<i64: 8, 128>}]} {
    %c0 = arith.constant 0 : index
    %c0_0 = arith.constant 0 : index
    %0 = vector.load %arg1[%c0, %c0_0] : memref<8x12xf32, #tpu.memory_space<vmem>>, vector<8x12xf32>
    %c0_1 = arith.constant 0 : index
    %c0_2 = arith.constant 0 : index
    %1 = vector.load %arg3[%c0_1, %c0_2] : memref<12x128xf32, #tpu.memory_space<vmem>>, vector<12x128xf32>
    %cst = arith.constant dense<0.000000e+00> : vector<8x128xf32>
    %2 = tpu.matmul %0, %1, %cst {dimension_numbers = #tpu.dot_dimension_numbers<[1], [0], [0], [1], [0, 0, 1, 1], [], []>} : vector<8x12xf32>, vector<12x128xf32>, vector<8x128xf32> -> vector<8x128xf32>
    %c0_3 = arith.constant 0 : index
    %c0_4 = arith.constant 0 : index
    %3 = vector.load %arg2[%c0_3, %c0_4] : memref<8x4xf32, #tpu.memory_space<vmem>>, vector<8x4xf32>
    %c0_5 = arith.constant 0 : index
    %c0_6 = arith.constant 0 : index
    %4 = vector.load %arg4[%c0_5, %c0_6] : memref<4x128xf32, #tpu.memory_space<vmem>>, vector<4x128xf32>
    %cst_7 = arith.constant dense<0.000000e+00> : vector<8x128xf32>
    %5 = tpu.matmul %3, %4, %cst_7 {dimension_numbers = #tpu.dot_dimension_numbers<[1], [0], [0], [1], [0, 0, 1, 1], [], []>} : vector<8x4xf32>, vector<4x128xf32>, vector<8x128xf32> -> vector<8x128xf32>
    %6 = arith.addf %2, %5 : vector<8x128xf32>
    %c0_8 = arith.constant 0 : index
    %c0_9 = arith.constant 0 : index
    %7 = vector.load %arg5[%c0_8, %c0_9] : memref<1x128xf32, #tpu.memory_space<vmem>>, vector<1x128xf32>
    %8 = vector.broadcast %7 : vector<1x128xf32> to vector<8x128xf32>
    %9 = arith.addf %6, %8 : vector<8x128xf32>
    %cst_10 = arith.constant 0.000000e+00 : f32
    %10 = vector.broadcast %cst_10 : f32 to vector<8x128xf32>
    %11 = arith.maximumf %9, %10 : vector<8x128xf32>
    %c0_11 = arith.constant 0 : index
    %c0_12 = arith.constant 0 : index
    %c0_13 = arith.constant 0 : index
    %12 = vector.load %arg7[%c0_11, %c0_12, %c0_13] : memref<4x128x128xf32, #tpu.memory_space<vmem>>, vector<1x128x128xf32>
    %13 = vector.shape_cast %12 : vector<1x128x128xf32> to vector<128x128xf32>
    %cst_14 = arith.constant dense<0.000000e+00> : vector<8x128xf32>
    %14 = tpu.matmul %11, %13, %cst_14 {dimension_numbers = #tpu.dot_dimension_numbers<[1], [0], [0], [1], [0, 0, 1, 1], [], []>} : vector<8x128xf32>, vector<128x128xf32>, vector<8x128xf32> -> vector<8x128xf32>
    %cst_15 = arith.constant 0.000000e+00 : f32
    %15 = vector.broadcast %cst_15 : f32 to vector<8x128xf32>
    %16 = arith.maximumf %14, %15 : vector<8x128xf32>
    %c1 = arith.constant 1 : index
    %c0_16 = arith.constant 0 : index
    %c0_17 = arith.constant 0 : index
    %17 = vector.load %arg7[%c1, %c0_16, %c0_17] : memref<4x128x128xf32, #tpu.memory_space<vmem>>, vector<1x128x128xf32>
    %18 = vector.shape_cast %17 : vector<1x128x128xf32> to vector<128x128xf32>
    %cst_18 = arith.constant dense<0.000000e+00> : vector<8x128xf32>
    %19 = tpu.matmul %16, %18, %cst_18 {dimension_numbers = #tpu.dot_dimension_numbers<[1], [0], [0], [1], [0, 0, 1, 1], [], []>} : vector<8x128xf32>, vector<128x128xf32>, vector<8x128xf32> -> vector<8x128xf32>
    %cst_19 = arith.constant 0.000000e+00 : f32
    %20 = vector.broadcast %cst_19 : f32 to vector<8x128xf32>
    %21 = arith.maximumf %19, %20 : vector<8x128xf32>
    %c2 = arith.constant 2 : index
    %c0_20 = arith.constant 0 : index
    %c0_21 = arith.constant 0 : index
    %22 = vector.load %arg7[%c2, %c0_20, %c0_21] : memref<4x128x128xf32, #tpu.memory_space<vmem>>, vector<1x128x128xf32>
    %23 = vector.shape_cast %22 : vector<1x128x128xf32> to vector<128x128xf32>
    %cst_22 = arith.constant dense<0.000000e+00> : vector<8x128xf32>
    %24 = tpu.matmul %21, %23, %cst_22 {dimension_numbers = #tpu.dot_dimension_numbers<[1], [0], [0], [1], [0, 0, 1, 1], [], []>} : vector<8x128xf32>, vector<128x128xf32>, vector<8x128xf32> -> vector<8x128xf32>
    %cst_23 = arith.constant 0.000000e+00 : f32
    %25 = vector.broadcast %cst_23 : f32 to vector<8x128xf32>
    %26 = arith.maximumf %24, %25 : vector<8x128xf32>
    %c3 = arith.constant 3 : index
    %c0_24 = arith.constant 0 : index
    %c0_25 = arith.constant 0 : index
    %27 = vector.load %arg7[%c3, %c0_24, %c0_25] : memref<4x128x128xf32, #tpu.memory_space<vmem>>, vector<1x128x128xf32>
    %28 = vector.shape_cast %27 : vector<1x128x128xf32> to vector<128x128xf32>
    %cst_26 = arith.constant dense<0.000000e+00> : vector<8x128xf32>
    %29 = tpu.matmul %26, %28, %cst_26 {dimension_numbers = #tpu.dot_dimension_numbers<[1], [0], [0], [1], [0, 0, 1, 1], [], []>} : vector<8x128xf32>, vector<128x128xf32>, vector<8x128xf32> -> vector<8x128xf32>
    %c0_27 = arith.constant 0 : index
    %c0_28 = arith.constant 0 : index
    %30 = vector.load %arg6[%c0_27, %c0_28] : memref<12x128xf32, #tpu.memory_space<vmem>>, vector<12x128xf32>
    %cst_29 = arith.constant dense<0.000000e+00> : vector<8x128xf32>
    %31 = tpu.matmul %0, %30, %cst_29 {dimension_numbers = #tpu.dot_dimension_numbers<[1], [0], [0], [1], [0, 0, 1, 1], [], []>} : vector<8x12xf32>, vector<12x128xf32>, vector<8x128xf32> -> vector<8x128xf32>
    %32 = arith.addf %29, %31 : vector<8x128xf32>
    %c0_30 = arith.constant 0 : index
    %c0_31 = arith.constant 0 : index
    %33 = vector.load %arg8[%c0_30, %c0_31] : memref<8x128xf32, #tpu.memory_space<vmem>>, vector<8x128xf32>
    tpu.vector_store %arg8[%c0_30, %c0_31], %32 {strides = array<i32>} : memref<8x128xf32, #tpu.memory_space<vmem>>, vector<8x128xf32>,
    return
  }
  func.func @transform_0(%arg0: i32) -> (i32, i32) {
    %c0_i32 = arith.constant 0 : i32
    %c0_i32_0 = arith.constant 0 : i32
    return %arg0, %c0_i32 : i32, i32
  }
  func.func @transform_1(%arg0: i32) -> (i32, i32) {
    %c0_i32 = arith.constant 0 : i32
    %c0_i32_0 = arith.constant 0 : i32
    return %arg0, %c0_i32 : i32, i32
  }
  func.func @transform_2(%arg0: i32) -> (i32, i32) {
    %c0_i32 = arith.constant 0 : i32
    %c0_i32_0 = arith.constant 0 : i32
    %c0_i32_1 = arith.constant 0 : i32
    return %c0_i32, %c0_i32_0 : i32, i32
  }
  func.func @transform_3(%arg0: i32) -> (i32, i32) {
    %c0_i32 = arith.constant 0 : i32
    %c0_i32_0 = arith.constant 0 : i32
    %c0_i32_1 = arith.constant 0 : i32
    return %c0_i32, %c0_i32_0 : i32, i32
  }
  func.func @transform_4(%arg0: i32) -> (i32, i32) {
    %c0_i32 = arith.constant 0 : i32
    %c0_i32_0 = arith.constant 0 : i32
    %c0_i32_1 = arith.constant 0 : i32
    return %c0_i32, %c0_i32_0 : i32, i32
  }
  func.func @transform_5(%arg0: i32) -> (i32, i32) {
    %c0_i32 = arith.constant 0 : i32
    %c0_i32_0 = arith.constant 0 : i32
    %c0_i32_1 = arith.constant 0 : i32
    return %c0_i32, %c0_i32_0 : i32, i32
  }
  func.func @transform_6(%arg0: i32) -> (i32, i32, i32) {
    %c0_i32 = arith.constant 0 : i32
    %c0_i32_0 = arith.constant 0 : i32
    %c0_i32_1 = arith.constant 0 : i32
    %c0_i32_2 = arith.constant 0 : i32
    return %c0_i32, %c0_i32_0, %c0_i32_1 : i32, i32, i32
  }
  func.func @transform_7(%arg0: i32) -> (i32, i32) {
    %c0_i32 = arith.constant 0 : i32
    %c0_i32_0 = arith.constant 0 : i32
    return %arg0, %c0_i32 : i32, i32
  }
}

</mosaic_0001>

<llo_original>
// kernel: dynamics_forward.1
$region0: #{dynamics_forward.1}
  #allocation0 [shape = 'u32[]', space=smem, size = 0x4, offset = 0x4, fixed_abs, tag = 'smem constant byte address 0x4 - core index']
  #allocation1 [shape = 'u32[144,128]{1,0:T(1,128)}', space=vmem, size = 0x12000, scoped, tag = 'internal scratch']
  %s0 = inlined_call_operand.vmem [shape: f32[8,12], index: 0, kind: input, shape index: {}]
  %s1 = inlined_call_operand.vmem [shape: f32[8,4], index: 1, kind: input, shape index: {}]
  %s2 = inlined_call_operand.vmem [shape: f32[12,128], index: 2, kind: input, shape index: {}]
  %s3 = inlined_call_operand.vmem [shape: f32[4,128], index: 3, kind: input, shape index: {}]
  %s4 = inlined_call_operand.vmem [shape: f32[1,128], index: 4, kind: input, shape index: {}]
  %s5 = inlined_call_operand.vmem [shape: f32[12,128], index: 5, kind: input, shape index: {}]
  %s6 = inlined_call_operand.vmem [shape: f32[4,128,128], index: 6, kind: input, shape index: {}]
  %s7 = inlined_call_operand.vmem [shape: f32[8,128], index: 7, kind: output, shape index: {}]
  %s8 = sld [smem:[#allocation0]]
  $region38: #{dynamics_forward.1} parent=0
    _
  %s10 = ssub.s32 1, %s8
  %s11 = scalar_select 0, %s10, %s8
  // Predicated region
  $region2: #{dynamics_forward.1} parent=0 // pred_check
    _
  $region3: #{dynamics_forward.1} parent=0 // pred_check_branch
    %13 = sbr.rel (0) target = $region5
  $region4: #{dynamics_forward.1} parent=0 // pred_region
    _
  $region5: #{dynamics_forward.1} parent=0 // pred_fallthru
    _
  // Predicated region
  $region6: #{dynamics_forward.1} parent=0 // pred_check
    _
  $region7: #{dynamics_forward.1} parent=0 // pred_check_branch
    %15 = sbr.rel (0) target = $region9
  $region8: #{dynamics_forward.1} parent=0 // pred_region
    _
  $region9: #{dynamics_forward.1} parent=0 // pred_fallthru
    _
  // Predicated region
  $region10: #{dynamics_forward.1} parent=0 // pred_check
    _
  $region11: #{dynamics_forward.1} parent=0 // pred_check_branch
    %17 = sbr.rel (0) target = $region13
  $region12: #{dynamics_forward.1} parent=0 // pred_region
    _
  $region13: #{dynamics_forward.1} parent=0 // pred_fallthru
    _
  // Predicated region
  $region14: #{dynamics_forward.1} parent=0 // pred_check
    _
  $region15: #{dynamics_forward.1} parent=0 // pred_check_branch
    %19 = sbr.rel (0) target = $region17
  $region16: #{dynamics_forward.1} parent=0 // pred_region
    _
  $region17: #{dynamics_forward.1} parent=0 // pred_fallthru
    _
  // Predicated region
  $region18: #{dynamics_forward.1} parent=0 // pred_check
    _
  $region19: #{dynamics_forward.1} parent=0 // pred_check_branch
    %21 = sbr.rel (0) target = $region21
  $region20: #{dynamics_forward.1} parent=0 // pred_region
    _
  $region21: #{dynamics_forward.1} parent=0 // pred_fallthru
    _
  // Predicated region
  $region22: #{dynamics_forward.1} parent=0 // pred_check
    _
  $region23: #{dynamics_forward.1} parent=0 // pred_check_branch
    %23 = sbr.rel (0) target = $region25
  $region24: #{dynamics_forward.1} parent=0 // pred_region
    _
  $region25: #{dynamics_forward.1} parent=0 // pred_fallthru
    _
  // Predicated region
  $region26: #{dynamics_forward.1} parent=0 // pred_check
    _
  $region27: #{dynamics_forward.1} parent=0 // pred_check_branch
    %25 = sbr.rel (0) target = $region29
  $region28: #{dynamics_forward.1} parent=0 // pred_region
    _
  $region29: #{dynamics_forward.1} parent=0 // pred_fallthru
    _
  %v26 = vld [vmem:[%s0] sm:$0xff]
  %v27 = vld [vmem:[%s2] sm:$0xff]
  %v28 = vld [vmem:[%s2 + $0x8] sm:$0xf]
  %v29 = vld [vmem:[%s1] sm:$0xff]
  %v30 = vld [vmem:[%s3] sm:$0xf]
  %vm31 = vcmask 31744
  %v33 = vsel %vm31, %v29, 0
  %vm35 = vcmask 1043456
  %v37 = vsel %vm35, %v30, 0
  %39 = vmatprep.subr.mxu0 0.0
  %40 = vmatpush1.msra.mxu0 %v37
  %41 = vmatprep.subr.mxu0 0.0
  %42 = vmatpush1.msra.mxu0 0.0
  %43 = vmatprep.subr.mxu0 0.0
  %44 = vmatpush1.msra.mxu0 0.0
  %45 = vmatprep.subr.mxu0 0.0
  %46 = vmatpush1.msra.mxu0 0.0
  %47 = vmatprep.subr.mxu0 0.0
  %48 = vmatpush1.msra.mxu0 0.0
  %49 = vmatprep.subr.mxu0 0.0
  %50 = vmatpush1.msra.mxu0 0.0
  %51 = vmatprep.subr.mxu0 0.0
  %52 = vmatpush1.msra.mxu0 0.0
  %53 = vmatprep.subr.mxu0 0.0
  %54 = vmatpush1.msra.mxu0 0.0
  %55 = vmatprep.subr.mxu0 0.0
  %56 = vmatpush1.msra.mxu0 0.0
  %57 = vmatprep.subr.mxu0 0.0
  %58 = vmatpush1.msra.mxu0 0.0
  %59 = vmatprep.subr.mxu0 0.0
  %60 = vmatpush1.msra.mxu0 0.0
  %61 = vmatprep.subr.mxu0 0.0
  %62 = vmatpush1.msra.mxu0 0.0
  %63 = vmatprep.subr.mxu0 0.0
  %64 = vmatpush1.msra.mxu0 0.0
  %65 = vmatprep.subr.mxu0 0.0
  %66 = vmatpush1.msra.mxu0 0.0
  %67 = vmatprep.subr.mxu0 0.0
  %68 = vmatpush1.msra.mxu0 0.0
  %69 = vmatprep.subr.mxu0 0.0
  %70 = vmatpush1.msra.mxu0 0.0
  %71 = vmatprep.subr.mxu0 0.0
  %72 = vmatpush1.msra.mxu0 0.0
  %73 = vmatprep.subr.mxu0 0.0
  %74 = vmatpush1.msra.mxu0 0.0
  %75 = vmatprep.subr.mxu0 0.0
  %76 = vmatpush1.msra.mxu0 0.0
  %77 = vmatprep.subr.mxu0 0.0
  %78 = vmatpush1.msra.mxu0 0.0
  %79 = vmatprep.subr.mxu0 0.0
  %80 = vmatpush1.msra.mxu0 0.0
  %81 = vmatprep.subr.mxu0 0.0
  %82 = vmatpush1.msra.mxu0 0.0
  %83 = vmatprep.subr.mxu0 0.0
  %84 = vmatpush1.msra.mxu0 0.0
  %85 = vmatprep.subr.mxu0 0.0
  %86 = vmatpush1.msra.mxu0 0.0
  %87 = vmatprep.subr.mxu0 0.0
  %88 = vmatpush1.msra.mxu0 0.0
  %89 = vmatprep.subr.mxu0 0.0
  %90 = vmatpush1.msra.mxu0 0.0
  %91 = vmatprep.subr.mxu0 0.0
  %92 = vmatpush1.msra.mxu0 0.0
  %93 = vmatprep.subr.mxu0 0.0
  %94 = vmatpush1.msra.mxu0 0.0
  %95 = vmatprep.subr.mxu0 0.0
  %96 = vmatpush1.msra.mxu0 0.0
  %97 = vmatprep.subr.mxu0 0.0
  %98 = vmatpush1.msra.mxu0 0.0
  %99 = vmatprep.subr.mxu0 0.0
  %100 = vmatpush1.msra.mxu0 0.0
  %101 = vmatprep.subr.mxu0 0.0
  %102 = vmatpush1.msra.mxu0 0.0
  %103 = vmatprep.mubr.f32.mxu0 0.0
  %104 = vmatmul.mubr.f32.gmra.mrb[0].mxu0 %v33
  %v105 = vpop.f32.mrb[0].mxu0
  %v106 = vadd.f32 0.0, %v105
  %v107 = vpop.f32.mrb[0].mxu0
  %108 = vdwg.mxu0
  %vm109 = vcmask 97280
  %v111 = vsel %vm109, %v26, 0
  %v114 = vsel %vm35, %v28, 0
  %116 = vmatprep.subr.mxu0 0.0
  %117 = vmatpush1.msra.mxu0 %v27
  %118 = vmatprep.subr.mxu0 0.0
  %119 = vmatpush1.msra.mxu0 %v114
  %120 = vmatprep.subr.mxu0 0.0
  %121 = vmatpush1.msra.mxu0 0.0
  %122 = vmatprep.subr.mxu0 0.0
  %123 = vmatpush1.msra.mxu0 0.0
  %124 = vmatprep.subr.mxu0 0.0
  %125 = vmatpush1.msra.mxu0 0.0
  %126 = vmatprep.subr.mxu0 0.0
  %127 = vmatpush1.msra.mxu0 0.0
  %128 = vmatprep.subr.mxu0 0.0
  %129 = vmatpush1.msra.mxu0 0.0
  %130 = vmatprep.subr.mxu0 0.0
  %131 = vmatpush1.msra.mxu0 0.0
  %132 = vmatprep.subr.mxu0 0.0
  %133 = vmatpush1.msra.mxu0 0.0
  %134 = vmatprep.subr.mxu0 0.0
  %135 = vmatpush1.msra.mxu0 0.0
  %136 = vmatprep.subr.mxu0 0.0
  %137 = vmatpush1.msra.mxu0 0.0
  %138 = vmatprep.subr.mxu0 0.0
  %139 = vmatpush1.msra.mxu0 0.0
  %140 = vmatprep.subr.mxu0 0.0
  %141 = vmatpush1.msra.mxu0 0.0
  %142 = vmatprep.subr.mxu0 0.0
  %143 = vmatpush1.msra.mxu0 0.0
  %144 = vmatprep.subr.mxu0 0.0
  %145 = vmatpush1.msra.mxu0 0.0
  %146 = vmatprep.subr.mxu0 0.0
  %147 = vmatpush1.msra.mxu0 0.0
  %148 = vmatprep.subr.mxu0 0.0
  %149 = vmatpush1.msra.mxu0 0.0
  %150 = vmatprep.subr.mxu0 0.0
  %151 = vmatpush1.msra.mxu0 0.0
  %152 = vmatprep.subr.mxu0 0.0
  %153 = vmatpush1.msra.mxu0 0.0
  %154 = vmatprep.subr.mxu0 0.0
  %155 = vmatpush1.msra.mxu0 0.0
  %156 = vmatprep.subr.mxu0 0.0
  %157 = vmatpush1.msra.mxu0 0.0
  %158 = vmatprep.subr.mxu0 0.0
  %159 = vmatpush1.msra.mxu0 0.0
  %160 = vmatprep.subr.mxu0 0.0
  %161 = vmatpush1.msra.mxu0 0.0
  %162 = vmatprep.subr.mxu0 0.0
  %163 = vmatpush1.msra.mxu0 0.0
  %164 = vmatprep.subr.mxu0 0.0
  %165 = vmatpush1.msra.mxu0 0.0
  %166 = vmatprep.subr.mxu0 0.0
  %167 = vmatpush1.msra.mxu0 0.0
  %168 = vmatprep.subr.mxu0 0.0
  %169 = vmatpush1.msra.mxu0 0.0
  %170 = vmatprep.subr.mxu0 0.0
  %171 = vmatpush1.msra.mxu0 0.0
  %172 = vmatprep.subr.mxu0 0.0
  %173 = vmatpush1.msra.mxu0 0.0
  %174 = vmatprep.subr.mxu0 0.0
  %175 = vmatpush1.msra.mxu0 0.0
  %176 = vmatprep.subr.mxu0 0.0
  %177 = vmatpush1.msra.mxu0 0.0
  %178 = vmatprep.subr.mxu0 0.0
  %179 = vmatpush1.msra.mxu0 0.0
  %180 = vmatprep.mubr.f32.mxu0 0.0
  %181 = vmatmul.mubr.f32.gmra.mrb[0].mxu0 %v111
  %v182 = vpop.f32.mrb[0].mxu0
  %v183 = vadd.f32 %v106, %v182
  %v184 = vpop.f32.mrb[0].mxu0
  %185 = vdwg.mxu0
  %v186 = vld [vmem:[%s4] sm:$0x1]
  %v188 = vlaneseq
  %v189 = vshrl.u32 %v188, 7
  %v190 = vsub.s32 0, %v189
  %v191 = vrot.slane %v186, %v190
  %v193 = vadd.f32 %v183, %v191
  %v194 = vmax.f32 %v193, 0.0
  %v195 = vld [vmem:[%s6] sm:$0xff]
  %v196 = vld [vmem:[%s6 + $0x8] sm:$0xff]
  %v197 = vld [vmem:[%s6 + $0x10] sm:$0xff]
  %v198 = vld [vmem:[%s6 + $0x18] sm:$0xff]
  %v199 = vld [vmem:[%s6 + $0x20] sm:$0xff]
  %v200 = vld [vmem:[%s6 + $0x28] sm:$0xff]
  %v201 = vld [vmem:[%s6 + $0x30] sm:$0xff]
  %v202 = vld [vmem:[%s6 + $0x38] sm:$0xff]
  %v203 = vld [vmem:[%s6 + $0x40] sm:$0xff]
  %v204 = vld [vmem:[%s6 + $0x48] sm:$0xff]
  %v205 = vld [vmem:[%s6 + $0x50] sm:$0xff]
  %v206 = vld [vmem:[%s6 + $0x58] sm:$0xff]
  %v207 = vld [vmem:[%s6 + $0x60] sm:$0xff]
  %v208 = vld [vmem:[%s6 + $0x68] sm:$0xff]
  %v209 = vld [vmem:[%s6 + $0x70] sm:$0xff]
  %v210 = vld [vmem:[%s6 + $0x78] sm:$0xff]
  %211 = vmatprep.subr.mxu0 0.0
  %212 = vmatpush1.msra.mxu0 %v195
  %213 = vmatprep.subr.mxu0 0.0
  %214 = vmatpush1.msra.mxu0 %v196
  %215 = vmatprep.subr.mxu0 0.0
  %216 = vmatpush1.msra.mxu0 %v197
  %217 = vmatprep.subr.mxu0 0.0
  %218 = vmatpush1.msra.mxu0 %v198
  %219 = vmatprep.subr.mxu0 0.0
  %220 = vmatpush1.msra.mxu0 %v199
  %221 = vmatprep.subr.mxu0 0.0
  %222 = vmatpush1.msra.mxu0 %v200
  %223 = vmatprep.subr.mxu0 0.0
  %224 = vmatpush1.msra.mxu0 %v201
  %225 = vmatprep.subr.mxu0 0.0
  %226 = vmatpush1.msra.mxu0 %v202
  %227 = vmatprep.subr.mxu0 0.0
  %228 = vmatpush1.msra.mxu0 %v203
  %229 = vmatprep.subr.mxu0 0.0
  %230 = vmatpush1.msra.mxu0 %v204
  %231 = vmatprep.subr.mxu0 0.0
  %232 = vmatpush1.msra.mxu0 %v205
  %233 = vmatprep.subr.mxu0 0.0
  %234 = vmatpush1.msra.mxu0 %v206
  %235 = vmatprep.subr.mxu0 0.0
  %236 = vmatpush1.msra.mxu0 %v207
  %237 = vmatprep.subr.mxu0 0.0
  %238 = vmatpush1.msra.mxu0 %v208
  %239 = vmatprep.subr.mxu0 0.0
  %240 = vmatpush1.msra.mxu0 %v209
  %241 = vmatprep.subr.mxu0 0.0
  %242 = vmatpush1.msra.mxu0 %v210
  %243 = vmatprep.subr.mxu0 0.0
  %244 = vmatpush1.msra.mxu0 0.0
  %245 = vmatprep.subr.mxu0 0.0
  %246 = vmatpush1.msra.mxu0 0.0
  %247 = vmatprep.subr.mxu0 0.0
  %248 = vmatpush1.msra.mxu0 0.0
  %249 = vmatprep.subr.mxu0 0.0
  %250 = vmatpush1.msra.mxu0 0.0
  %251 = vmatprep.subr.mxu0 0.0
  %252 = vmatpush1.msra.mxu0 0.0
  %253 = vmatprep.subr.mxu0 0.0
  %254 = vmatpush1.msra.mxu0 0.0
  %255 = vmatprep.subr.mxu0 0.0
  %256 = vmatpush1.msra.mxu0 0.0
  %257 = vmatprep.subr.mxu0 0.0
  %258 = vmatpush1.msra.mxu0 0.0
  %259 = vmatprep.subr.mxu0 0.0
  %260 = vmatpush1.msra.mxu0 0.0
  %261 = vmatprep.subr.mxu0 0.0
  %262 = vmatpush1.msra.mxu0 0.0
  %263 = vmatprep.subr.mxu0 0.0
  %264 = vmatpush1.msra.mxu0 0.0
  %265 = vmatprep.subr.mxu0 0.0
  %266 = vmatpush1.msra.mxu0 0.0
  %267 = vmatprep.subr.mxu0 0.0
  %268 = vmatpush1.msra.mxu0 0.0
  %269 = vmatprep.subr.mxu0 0.0
  %270 = vmatpush1.msra.mxu0 0.0
  %271 = vmatprep.subr.mxu0 0.0
  %272 = vmatpush1.msra.mxu0 0.0
  %273 = vmatprep.subr.mxu0 0.0
  %274 = vmatpush1.msra.mxu0 0.0
  %275 = vmatprep.mubr.f32.mxu0 0.0
  %276 = vmatmul.mubr.f32.gmra.mrb[0].mxu0 %v194
  %v277 = vpop.f32.mrb[0].mxu0
  %v278 = vadd.f32 0.0, %v277
  %v279 = vpop.f32.mrb[0].mxu0
  %280 = vdwg.mxu0
  %v281 = vmax.f32 %v278, 0.0
  %s282 = scalar_lea.vmem %s6, 128
  %v283 = vld [vmem:[%s282] sm:$0xff]
  %v284 = vld [vmem:[%s282 + $0x8] sm:$0xff]
  %v285 = vld [vmem:[%s282 + $0x10] sm:$0xff]
  %v286 = vld [vmem:[%s282 + $0x18] sm:$0xff]
  %v287 = vld [vmem:[%s282 + $0x20] sm:$0xff]
  %v288 = vld [vmem:[%s282 + $0x28] sm:$0xff]
  %v289 = vld [vmem:[%s282 + $0x30] sm:$0xff]
  %v290 = vld [vmem:[%s282 + $0x38] sm:$0xff]
  %v291 = vld [vmem:[%s282 + $0x40] sm:$0xff]
  %v292 = vld [vmem:[%s282 + $0x48] sm:$0xff]
  %v293 = vld [vmem:[%s282 + $0x50] sm:$0xff]
  %v294 = vld [vmem:[%s282 + $0x58] sm:$0xff]
  %v295 = vld [vmem:[%s282 + $0x60] sm:$0xff]
  %v296 = vld [vmem:[%s282 + $0x68] sm:$0xff]
  %v297 = vld [vmem:[%s282 + $0x70] sm:$0xff]
  %v298 = vld [vmem:[%s282 + $0x78] sm:$0xff]
  %299 = vmatprep.subr.mxu0 0.0
  %300 = vmatpush1.msra.mxu0 %v283
  %301 = vmatprep.subr.mxu0 0.0
  %302 = vmatpush1.msra.mxu0 %v284
  %303 = vmatprep.subr.mxu0 0.0
  %304 = vmatpush1.msra.mxu0 %v285
  %305 = vmatprep.subr.mxu0 0.0
  %306 = vmatpush1.msra.mxu0 %v286
  %307 = vmatprep.subr.mxu0 0.0
  %308 = vmatpush1.msra.mxu0 %v287
  %309 = vmatprep.subr.mxu0 0.0
  %310 = vmatpush1.msra.mxu0 %v288
  %311 = vmatprep.subr.mxu0 0.0
  %312 = vmatpush1.msra.mxu0 %v289
  %313 = vmatprep.subr.mxu0 0.0
  %314 = vmatpush1.msra.mxu0 %v290
  %315 = vmatprep.subr.mxu0 0.0
  %316 = vmatpush1.msra.mxu0 %v291
  %317 = vmatprep.subr.mxu0 0.0
  %318 = vmatpush1.msra.mxu0 %v292
  %319 = vmatprep.subr.mxu0 0.0
  %320 = vmatpush1.msra.mxu0 %v293
  %321 = vmatprep.subr.mxu0 0.0
  %322 = vmatpush1.msra.mxu0 %v294
  %323 = vmatprep.subr.mxu0 0.0
  %324 = vmatpush1.msra.mxu0 %v295
  %325 = vmatprep.subr.mxu0 0.0
  %326 = vmatpush1.msra.mxu0 %v296
  %327 = vmatprep.subr.mxu0 0.0
  %328 = vmatpush1.msra.mxu0 %v297
  %329 = vmatprep.subr.mxu0 0.0
  %330 = vmatpush1.msra.mxu0 %v298
  %331 = vmatprep.subr.mxu0 0.0
  %332 = vmatpush1.msra.mxu0 0.0
  %333 = vmatprep.subr.mxu0 0.0
  %334 = vmatpush1.msra.mxu0 0.0
  %335 = vmatprep.subr.mxu0 0.0
  %336 = vmatpush1.msra.mxu0 0.0
  %337 = vmatprep.subr.mxu0 0.0
  %338 = vmatpush1.msra.mxu0 0.0
  %339 = vmatprep.subr.mxu0 0.0
  %340 = vmatpush1.msra.mxu0 0.0
  %341 = vmatprep.subr.mxu0 0.0
  %342 = vmatpush1.msra.mxu0 0.0
  %343 = vmatprep.subr.mxu0 0.0
  %344 = vmatpush1.msra.mxu0 0.0
  %345 = vmatprep.subr.mxu0 0.0
  %346 = vmatpush1.msra.mxu0 0.0
  %347 = vmatprep.subr.mxu0 0.0
  %348 = vmatpush1.msra.mxu0 0.0
  %349 = vmatprep.subr.mxu0 0.0
  %350 = vmatpush1.msra.mxu0 0.0
  %351 = vmatprep.subr.mxu0 0.0
  %352 = vmatpush1.msra.mxu0 0.0
  %353 = vmatprep.subr.mxu0 0.0
  %354 = vmatpush1.msra.mxu0 0.0
  %355 = vmatprep.subr.mxu0 0.0
  %356 = vmatpush1.msra.mxu0 0.0
  %357 = vmatprep.subr.mxu0 0.0
  %358 = vmatpush1.msra.mxu0 0.0
  %359 = vmatprep.subr.mxu0 0.0
  %360 = vmatpush1.msra.mxu0 0.0
  %361 = vmatprep.subr.mxu0 0.0
  %362 = vmatpush1.msra.mxu0 0.0
  %363 = vmatprep.mubr.f32.mxu0 0.0
  %364 = vmatmul.mubr.f32.gmra.mrb[0].mxu0 %v281
  %v365 = vpop.f32.mrb[0].mxu0
  %v366 = vadd.f32 0.0, %v365
  %v367 = vpop.f32.mrb[0].mxu0
  %368 = vdwg.mxu0
  %v369 = vmax.f32 %v366, 0.0
  %s370 = scalar_lea.vmem %s6, 256
  %v371 = vld [vmem:[%s370] sm:$0xff]
  %v372 = vld [vmem:[%s370 + $0x8] sm:$0xff]
  %v373 = vld [vmem:[%s370 + $0x10] sm:$0xff]
  %v374 = vld [vmem:[%s370 + $0x18] sm:$0xff]
  %v375 = vld [vmem:[%s370 + $0x20] sm:$0xff]
  %v376 = vld [vmem:[%s370 + $0x28] sm:$0xff]
  %v377 = vld [vmem:[%s370 + $0x30] sm:$0xff]
  %v378 = vld [vmem:[%s370 + $0x38] sm:$0xff]
  %v379 = vld [vmem:[%s370 + $0x40] sm:$0xff]
  %v380 = vld [vmem:[%s370 + $0x48] sm:$0xff]
  %v381 = vld [vmem:[%s370 + $0x50] sm:$0xff]
  %v382 = vld [vmem:[%s370 + $0x58] sm:$0xff]
  %v383 = vld [vmem:[%s370 + $0x60] sm:$0xff]
  %v384 = vld [vmem:[%s370 + $0x68] sm:$0xff]
  %v385 = vld [vmem:[%s370 + $0x70] sm:$0xff]
  %v386 = vld [vmem:[%s370 + $0x78] sm:$0xff]
  %387 = vmatprep.subr.mxu0 0.0
  %388 = vmatpush1.msra.mxu0 %v371
  %389 = vmatprep.subr.mxu0 0.0
  %390 = vmatpush1.msra.mxu0 %v372
  %391 = vmatprep.subr.mxu0 0.0
  %392 = vmatpush1.msra.mxu0 %v373
  %393 = vmatprep.subr.mxu0 0.0
  %394 = vmatpush1.msra.mxu0 %v374
  %395 = vmatprep.subr.mxu0 0.0
  %396 = vmatpush1.msra.mxu0 %v375
  %397 = vmatprep.subr.mxu0 0.0
  %398 = vmatpush1.msra.mxu0 %v376
  %399 = vmatprep.subr.mxu0 0.0
  %400 = vmatpush1.msra.mxu0 %v377
  %401 = vmatprep.subr.mxu0 0.0
  %402 = vmatpush1.msra.mxu0 %v378
  %403 = vmatprep.subr.mxu0 0.0
  %404 = vmatpush1.msra.mxu0 %v379
  %405 = vmatprep.subr.mxu0 0.0
  %406 = vmatpush1.msra.mxu0 %v380
  %407 = vmatprep.subr.mxu0 0.0
  %408 = vmatpush1.msra.mxu0 %v381
  %409 = vmatprep.subr.mxu0 0.0
  %410 = vmatpush1.msra.mxu0 %v382
  %411 = vmatprep.subr.mxu0 0.0
  %412 = vmatpush1.msra.mxu0 %v383
  %413 = vmatprep.subr.mxu0 0.0
  %414 = vmatpush1.msra.mxu0 %v384
  %415 = vmatprep.subr.mxu0 0.0
  %416 = vmatpush1.msra.mxu0 %v385
  %417 = vmatprep.subr.mxu0 0.0
  %418 = vmatpush1.msra.mxu0 %v386
  %419 = vmatprep.subr.mxu0 0.0
  %420 = vmatpush1.msra.mxu0 0.0
  %421 = vmatprep.subr.mxu0 0.0
  %422 = vmatpush1.msra.mxu0 0.0
  %423 = vmatprep.subr.mxu0 0.0
  %424 = vmatpush1.msra.mxu0 0.0
  %425 = vmatprep.subr.mxu0 0.0
  %426 = vmatpush1.msra.mxu0 0.0
  %427 = vmatprep.subr.mxu0 0.0
  %428 = vmatpush1.msra.mxu0 0.0
  %429 = vmatprep.subr.mxu0 0.0
  %430 = vmatpush1.msra.mxu0 0.0
  %431 = vmatprep.subr.mxu0 0.0
  %432 = vmatpush1.msra.mxu0 0.0
  %433 = vmatprep.subr.mxu0 0.0
  %434 = vmatpush1.msra.mxu0 0.0
  %435 = vmatprep.subr.mxu0 0.0
  %436 = vmatpush1.msra.mxu0 0.0
  %437 = vmatprep.subr.mxu0 0.0
  %438 = vmatpush1.msra.mxu0 0.0
  %439 = vmatprep.subr.mxu0 0.0
  %440 = vmatpush1.msra.mxu0 0.0
  %441 = vmatprep.subr.mxu0 0.0
  %442 = vmatpush1.msra.mxu0 0.0
  %443 = vmatprep.subr.mxu0 0.0
  %444 = vmatpush1.msra.mxu0 0.0
  %445 = vmatprep.subr.mxu0 0.0
  %446 = vmatpush1.msra.mxu0 0.0
  %447 = vmatprep.subr.mxu0 0.0
  %448 = vmatpush1.msra.mxu0 0.0
  %449 = vmatprep.subr.mxu0 0.0
  %450 = vmatpush1.msra.mxu0 0.0
  %451 = vmatprep.mubr.f32.mxu0 0.0
  %452 = vmatmul.mubr.f32.gmra.mrb[0].mxu0 %v369
  %v453 = vpop.f32.mrb[0].mxu0
  %v454 = vadd.f32 0.0, %v453
  %v455 = vpop.f32.mrb[0].mxu0
  %456 = vdwg.mxu0
  %v457 = vmax.f32 %v454, 0.0
  %s458 = scalar_lea.vmem %s6, 384
  %v459 = vld [vmem:[%s458] sm:$0xff]
  %v460 = vld [vmem:[%s458 + $0x8] sm:$0xff]
  %v461 = vld [vmem:[%s458 + $0x10] sm:$0xff]
  %v462 = vld [vmem:[%s458 + $0x18] sm:$0xff]
  %v463 = vld [vmem:[%s458 + $0x20] sm:$0xff]
  %v464 = vld [vmem:[%s458 + $0x28] sm:$0xff]
  %v465 = vld [vmem:[%s458 + $0x30] sm:$0xff]
  %v466 = vld [vmem:[%s458 + $0x38] sm:$0xff]
  %v467 = vld [vmem:[%s458 + $0x40] sm:$0xff]
  %v468 = vld [vmem:[%s458 + $0x48] sm:$0xff]
  %v469 = vld [vmem:[%s458 + $0x50] sm:$0xff]
  %v470 = vld [vmem:[%s458 + $0x58] sm:$0xff]
  %v471 = vld [vmem:[%s458 + $0x60] sm:$0xff]
  %v472 = vld [vmem:[%s458 + $0x68] sm:$0xff]
  %v473 = vld [vmem:[%s458 + $0x70] sm:$0xff]
  %v474 = vld [vmem:[%s458 + $0x78] sm:$0xff]
  %v475 = vld [vmem:[%s5] sm:$0xff]
  %v476 = vld [vmem:[%s5 + $0x8] sm:$0xf]
  %v478 = vsel %vm35, %v476, 0
  %480 = vmatprep.subr.mxu0 0.0
  %481 = vmatpush1.msra.mxu0 %v475
  %482 = vmatprep.subr.mxu0 0.0
  %483 = vmatpush1.msra.mxu0 %v478
  %484 = vmatprep.subr.mxu0 0.0
  %485 = vmatpush1.msra.mxu0 0.0
  %486 = vmatprep.subr.mxu0 0.0
  %487 = vmatpush1.msra.mxu0 0.0
  %488 = vmatprep.subr.mxu0 0.0
  %489 = vmatpush1.msra.mxu0 0.0
  %490 = vmatprep.subr.mxu0 0.0
  %491 = vmatpush1.msra.mxu0 0.0
  %492 = vmatprep.subr.mxu0 0.0
  %493 = vmatpush1.msra.mxu0 0.0
  %494 = vmatprep.subr.mxu0 0.0
  %495 = vmatpush1.msra.mxu0 0.0
  %496 = vmatprep.subr.mxu0 0.0
  %497 = vmatpush1.msra.mxu0 0.0
  %498 = vmatprep.subr.mxu0 0.0
  %499 = vmatpush1.msra.mxu0 0.0
  %500 = vmatprep.subr.mxu0 0.0
  %501 = vmatpush1.msra.mxu0 0.0
  %502 = vmatprep.subr.mxu0 0.0
  %503 = vmatpush1.msra.mxu0 0.0
  %504 = vmatprep.subr.mxu0 0.0
  %505 = vmatpush1.msra.mxu0 0.0
  %506 = vmatprep.subr.mxu0 0.0
  %507 = vmatpush1.msra.mxu0 0.0
  %508 = vmatprep.subr.mxu0 0.0
  %509 = vmatpush1.msra.mxu0 0.0
  %510 = vmatprep.subr.mxu0 0.0
  %511 = vmatpush1.msra.mxu0 0.0
  %512 = vmatprep.subr.mxu0 0.0
  %513 = vmatpush1.msra.mxu0 0.0
  %514 = vmatprep.subr.mxu0 0.0
  %515 = vmatpush1.msra.mxu0 0.0
  %516 = vmatprep.subr.mxu0 0.0
  %517 = vmatpush1.msra.mxu0 0.0
  %518 = vmatprep.subr.mxu0 0.0
  %519 = vmatpush1.msra.mxu0 0.0
  %520 = vmatprep.subr.mxu0 0.0
  %521 = vmatpush1.msra.mxu0 0.0
  %522 = vmatprep.subr.mxu0 0.0
  %523 = vmatpush1.msra.mxu0 0.0
  %524 = vmatprep.subr.mxu0 0.0
  %525 = vmatpush1.msra.mxu0 0.0
  %526 = vmatprep.subr.mxu0 0.0
  %527 = vmatpush1.msra.mxu0 0.0
  %528 = vmatprep.subr.mxu0 0.0
  %529 = vmatpush1.msra.mxu0 0.0
  %530 = vmatprep.subr.mxu0 0.0
  %531 = vmatpush1.msra.mxu0 0.0
  %532 = vmatprep.subr.mxu0 0.0
  %533 = vmatpush1.msra.mxu0 0.0
  %534 = vmatprep.subr.mxu0 0.0
  %535 = vmatpush1.msra.mxu0 0.0
  %536 = vmatprep.subr.mxu0 0.0
  %537 = vmatpush1.msra.mxu0 0.0
  %538 = vmatprep.subr.mxu0 0.0
  %539 = vmatpush1.msra.mxu0 0.0
  %540 = vmatprep.subr.mxu0 0.0
  %541 = vmatpush1.msra.mxu0 0.0
  %542 = vmatprep.subr.mxu0 0.0
  %543 = vmatpush1.msra.mxu0 0.0
  %544 = vmatprep.mubr.f32.mxu0 0.0
  %545 = vmatmul.mubr.f32.gmra.mrb[0].mxu0 %v111
  %v546 = vpop.f32.mrb[0].mxu0
  %v547 = vadd.f32 0.0, %v546
  %v548 = vpop.f32.mrb[0].mxu0
  %549 = vdwg.mxu0
  %550 = vmatprep.subr.mxu0 0.0
  %551 = vmatpush1.msra.mxu0 %v459
  %552 = vmatprep.subr.mxu0 0.0
  %553 = vmatpush1.msra.mxu0 %v460
  %554 = vmatprep.subr.mxu0 0.0
  %555 = vmatpush1.msra.mxu0 %v461
  %556 = vmatprep.subr.mxu0 0.0
  %557 = vmatpush1.msra.mxu0 %v462
  %558 = vmatprep.subr.mxu0 0.0
  %559 = vmatpush1.msra.mxu0 %v463
  %560 = vmatprep.subr.mxu0 0.0
  %561 = vmatpush1.msra.mxu0 %v464
  %562 = vmatprep.subr.mxu0 0.0
  %563 = vmatpush1.msra.mxu0 %v465
  %564 = vmatprep.subr.mxu0 0.0
  %565 = vmatpush1.msra.mxu0 %v466
  %566 = vmatprep.subr.mxu0 0.0
  %567 = vmatpush1.msra.mxu0 %v467
  %568 = vmatprep.subr.mxu0 0.0
  %569 = vmatpush1.msra.mxu0 %v468
  %570 = vmatprep.subr.mxu0 0.0
  %571 = vmatpush1.msra.mxu0 %v469
  %572 = vmatprep.subr.mxu0 0.0
  %573 = vmatpush1.msra.mxu0 %v470
  %574 = vmatprep.subr.mxu0 0.0
  %575 = vmatpush1.msra.mxu0 %v471
  %576 = vmatprep.subr.mxu0 0.0
  %577 = vmatpush1.msra.mxu0 %v472
  %578 = vmatprep.subr.mxu0 0.0
  %579 = vmatpush1.msra.mxu0 %v473
  %580 = vmatprep.subr.mxu0 0.0
  %581 = vmatpush1.msra.mxu0 %v474
  %582 = vmatprep.subr.mxu0 0.0
  %583 = vmatpush1.msra.mxu0 0.0
  %584 = vmatprep.subr.mxu0 0.0
  %585 = vmatpush1.msra.mxu0 0.0
  %586 = vmatprep.subr.mxu0 0.0
  %587 = vmatpush1.msra.mxu0 0.0
  %588 = vmatprep.subr.mxu0 0.0
  %589 = vmatpush1.msra.mxu0 0.0
  %590 = vmatprep.subr.mxu0 0.0
  %591 = vmatpush1.msra.mxu0 0.0
  %592 = vmatprep.subr.mxu0 0.0
  %593 = vmatpush1.msra.mxu0 0.0
  %594 = vmatprep.subr.mxu0 0.0
  %595 = vmatpush1.msra.mxu0 0.0
  %596 = vmatprep.subr.mxu0 0.0
  %597 = vmatpush1.msra.mxu0 0.0
  %598 = vmatprep.subr.mxu0 0.0
  %599 = vmatpush1.msra.mxu0 0.0
  %600 = vmatprep.subr.mxu0 0.0
  %601 = vmatpush1.msra.mxu0 0.0
  %602 = vmatprep.subr.mxu0 0.0
  %603 = vmatpush1.msra.mxu0 0.0
  %604 = vmatprep.subr.mxu0 0.0
  %605 = vmatpush1.msra.mxu0 0.0
  %606 = vmatprep.subr.mxu0 0.0
  %607 = vmatpush1.msra.mxu0 0.0
  %608 = vmatprep.subr.mxu0 0.0
  %609 = vmatpush1.msra.mxu0 0.0
  %610 = vmatprep.subr.mxu0 0.0
  %611 = vmatpush1.msra.mxu0 0.0
  %612 = vmatprep.subr.mxu0 0.0
  %613 = vmatpush1.msra.mxu0 0.0
  %614 = vmatprep.mubr.f32.mxu0 0.0
  %615 = vmatmul.mubr.f32.gmra.mrb[0].mxu0 %v457
  %v616 = vpop.f32.mrb[0].mxu0
  %v617 = vadd.f32 %v547, %v616
  %v618 = vpop.f32.mrb[0].mxu0
  %619 = vdwg.mxu0
  %620 = vst [vmem:[%s7] sm:$0xff] %v617
  // Predicated region
  $region30: #{dynamics_forward.1} parent=0 // pred_check
    _
  $region31: #{dynamics_forward.1} parent=0 // pred_check_branch
    %622 = sbr.rel (0) target = $region33
  $region32: #{dynamics_forward.1} parent=0 // pred_region
    _
  $region33: #{dynamics_forward.1} parent=0 // pred_fallthru
    _
  // Predicated region
  $region34: #{dynamics_forward.1} parent=0 // pred_check
    _
  $region35: #{dynamics_forward.1} parent=0 // pred_check_branch
    %624 = sbr.rel (0) target = $region37
  $region36: #{dynamics_forward.1} parent=0 // pred_region
    _
  $region37: #{dynamics_forward.1} parent=0 // pred_fallthru
    _

</llo_original>
